<compile_context>
chip_gen: v5e
topology: v5e:2x2
jax: 0.10.0
libtpu: 0.0.40
codegen_flags: <defaults>
</compile_context>

<pallas_src>
from functools import partial

import jax
import jax.numpy as jnp
from jax.experimental import pallas as pl
from jax.experimental.pallas import tpu as pltpu


# --------------------------------------------------------------------------- #
# Helpers
# --------------------------------------------------------------------------- #
def _round_up(n, m):
    return ((n + m - 1) // m) * m


def _cdiv(a, b):
    return (a + b - 1) // b


def _device_kind():
    try:
        return jax.devices()[0].device_kind.lower()
    except Exception:
        return ""


def _default_bf16_act():
    # v5e and older have no bf16 VPU/EUP -> keep the elementwise chain in f32.
    kind = _device_kind()
    return not any(tag in kind for tag in ("v2", "v3", "v4", "v5"))


def _num_parallel_cores():
    # Chips whose "parallel" grid axis is sharded across 2 TensorCores.
    kind = _device_kind()
    return 2 if any(tag in kind for tag in ("v7", "v4", "v5p")) else 1


_TILE_CANDIDATES = (1024, 896, 768, 640, 512, 384, 256, 128)
_STEP_OVERHEAD_ROWS = 256  # ~0.35us grid-step overhead expressed as rows of work


def _pick_tb(batch, tile_b, cores):
    """Pick a batch tile (multiple of 128 when possible) balancing pad waste,
    per-step overhead and TensorCore parallelism."""
    b8 = _round_up(max(batch, 8), 8)
    if b8 < 256:
        return b8  # tiny batch: single small tile, (tb, 1) output path
    cap = max(tile_b, 128)
    best_key, best_tb = None, 128
    for cand in _TILE_CANDIDATES:
        if cand > cap:
            continue
        b_pad = _round_up(batch, cand)
        steps = b_pad // cand
        # rows-equivalent sequential cost per TensorCore
        cost = (cand + _STEP_OVERHEAD_ROWS) * _cdiv(steps, cores)
        key = (cost, 0 if steps >= 2 else 1, -cand)
        if best_key is None or key < best_key:
            best_key, best_tb = key, cand
    return best_tb


# --------------------------------------------------------------------------- #
# Kernel
# --------------------------------------------------------------------------- #
def _critic_kernel(x_ref,
                   w1_ref, b1_ref,
                   w2_ref, b2_ref,
                   w3_ref, b3_ref,
                   w4_ref, b4_ref,
                   o_ref, *, bf16_act, lane_dense):
    """One batch tile of the fused critic MLP.

    x_ref        : (tb, K)      f32   (cast to bf16 in-kernel for the MXU)
    w{1,2,3}_ref : (in, out)    bf16  (VMEM-resident across the grid)
    b{1,2,3}_ref : (1, out)     f32
    w4_ref       : (1, hidsize) f32   (value-head row; VPU/XLU head)
    b4_ref       : (1, 1)       f32
    o_ref        : (tb//128, 128) f32 if lane_dense else (tb, 1) f32
    """
    act_dtype = jnp.bfloat16 if bf16_act else jnp.float32

    def layer(h, w_ref, b_ref):
        # MXU matmul with f32 accumulation; bias-add in f32, tanh on the EUP in
        # act_dtype (bf16 on v6e/v7x halves EUP time + intermediate traffic).
        acc = jnp.dot(h, w_ref[...], preferred_element_type=jnp.float32) + b_ref[...]
        return jnp.tanh(acc.astype(act_dtype))

    h = layer(x_ref[...].astype(jnp.bfloat16), w1_ref, b1_ref)
    h = layer(h.astype(jnp.bfloat16), w2_ref, b2_ref)
    h = layer(h.astype(jnp.bfloat16), w3_ref, b3_ref)

    # Value head (out_features == 1): VPU multiply + XLU lane reduction instead
    # of an N=1 MXU matmul.  w4 is f32 so the product/reduce accumulate in f32.
    hw = h * w4_ref[...]                                   # (tb, hid) f32
    if lane_dense:
        rows, lanes = o_ref.shape                          # (tb//128, 128)
        # Leading-dim split (layout-preserving) then lane reduce -> lane-dense
        # output block: unmasked 128-wide stores + dense writeback DMA.
        v = jnp.sum(hw.reshape(rows, lanes, hw.shape[-1]), axis=-1) + b4_ref[...]
    else:
        v = jnp.sum(hw, axis=-1, keepdims=True) + b4_ref[...]
    o_ref[...] = v.astype(o_ref.dtype)


# --------------------------------------------------------------------------- #
# Wrapper
# --------------------------------------------------------------------------- #
def critic_forward(x, params, *, tile_b=1024, bf16_act=None):
    """x: (B, state_size) float32 -> state values (B, 1) float32."""
    (w1, b1), (w2, b2), (w3, b3), (w4, b4) = params
    B, K = x.shape
    h1_dim, h2_dim, h3_dim = w1.shape[1], w2.shape[1], w3.shape[1]

    if bf16_act is None:
        bf16_act = _default_bf16_act()
    cores = _num_parallel_cores()

    tb = _pick_tb(B, tile_b, cores)
    b_pad = _round_up(B, tb)
    lane_dense = (tb % 128 == 0)
    grid_steps = b_pad // tb

    # ---- wrapper-side prep (trace-time; no K padding, x stays f32) ----------
    x_p = x.astype(jnp.float32)
    if b_pad != B:
        x_p = jnp.pad(x_p, ((0, b_pad - B), (0, 0)))

    w1_b = w1.astype(jnp.bfloat16)
    w2_b = w2.astype(jnp.bfloat16)
    w3_b = w3.astype(jnp.bfloat16)
    w4_row = jnp.asarray(w4).reshape(1, -1).astype(jnp.float32)   # (1, hidsize)
    b1_r = jnp.asarray(b1).reshape(1, -1).astype(jnp.float32)
    b2_r = jnp.asarray(b2).reshape(1, -1).astype(jnp.float32)
    b3_r = jnp.asarray(b3).reshape(1, -1).astype(jnp.float32)
    b4_r = jnp.asarray(b4).reshape(1, 1).astype(jnp.float32)

    const = lambda i: (0, 0)   # weights/biases: same block every grid step

    if lane_dense:
        rows = tb // 128
        out_shape = jax.ShapeDtypeStruct((grid_steps, rows, 128), jnp.float32)
        out_spec = pl.BlockSpec((None, rows, 128), lambda i: (i, 0, 0))
    else:
        out_shape = jax.ShapeDtypeStruct((b_pad, 1), jnp.float32)
        out_spec = pl.BlockSpec((tb, 1), lambda i: (i, 0))

    kernel = partial(_critic_kernel, bf16_act=bf16_act, lane_dense=lane_dense)

    out = pl.pallas_call(
        kernel,
        out_shape=out_shape,
        grid=(grid_steps,),
        in_specs=[
            pl.BlockSpec((tb, K), lambda i: (i, 0)),       # x tile (true K)
            pl.BlockSpec((K, h1_dim), const),              # W1
            pl.BlockSpec((1, h1_dim), const),              # b1
            pl.BlockSpec((h1_dim, h2_dim), const),         # W2
            pl.BlockSpec((1, h2_dim), const),              # b2
            pl.BlockSpec((h2_dim, h3_dim), const),         # W3
            pl.BlockSpec((1, h3_dim), const),              # b3
            pl.BlockSpec((1, h3_dim), const),              # W4 (row, f32)
            pl.BlockSpec((1, 1), const),                   # b4
        ],
        out_specs=out_spec,
        compiler_params=pltpu.CompilerParams(
            dimension_semantics=("parallel",),
            vmem_limit_bytes=32 << 20,   # safe on v7x (64 MiB phys), ample on v5e/v6e
        ),
    )(x_p, w1_b, b1_r, w2_b, b2_r, w3_b, b3_r, w4_row, b4_r)

    if lane_dense:
        out = out.reshape(b_pad, 1)
    return out[:B]


def critic_evaluate(x, params):
    # Mirrors CriticNetwork.evaluate: torch.squeeze(state_value)
    return jnp.squeeze(critic_forward(x, params))


def init_params(key, state_size, hidsize1=512, hidsize2=256, hidsize=256):
    """PyTorch-style uniform +-1/sqrt(fan_in) init.

    Weights in (in_features, out_features) layout, biases as (1, out) rows.
    """
    dims = [(state_size, hidsize1),   # feature extractor layer 1
            (hidsize1, hidsize2),     # feature extractor layer 2
            (hidsize2, hidsize),      # critic layer 1
            (hidsize, 1)]             # critic output layer
    params = []
    for (fan_in, fan_out) in dims:
        key, kw, kb = jax.random.split(key, 3)
        bound = 1.0 / jnp.sqrt(jnp.float32(fan_in))
        w = jax.random.uniform(kw, (fan_in, fan_out), jnp.float32, -bound, bound)
        b = jax.random.uniform(kb, (1, fan_out), jnp.float32, -bound, bound)
        params.append((w, b))
    return params


# TODO(synk): torch.optim.Adam state and save()/load() checkpointing are host-side
# concerns with no Pallas equivalent; only the forward/evaluate path is kerneled.

if __name__ == "__main__":
    key = jax.random.PRNGKey(0)
    k_params, k_x1, k_x2, k_x3 = jax.random.split(key, 4)

    state_size = 32
    params = init_params(k_params, state_size)

    def ref_forward(x, params):
        (w1, b1), (w2, b2), (w3, b3), (w4, b4) = params
        h = jnp.tanh(x @ w1 + b1)
        h = jnp.tanh(h @ w2 + b2)
        h = jnp.tanh(h @ w3 + b3)
        return h @ w4 + b4

    tol = dict(atol=4e-2, rtol=4e-2)   # bf16 matmul operands (+ bf16 tanh on v6e/v7x)

    # Small inference-style batch: single tiny tile, (tb, 1) output path.
    x_small = jax.random.normal(k_x1, (8, state_size), jnp.float32)
    v_small = jax.block_until_ready(critic_forward(x_small, params))
    ref_small = ref_forward(x_small, params)
    assert v_small.shape == (8, 1), v_small.shape
    assert jnp.allclose(v_small, ref_small, **tol), (
        "mismatch vs reference (small)",
        float(jnp.max(jnp.abs(v_small - ref_small))))

    # Ragged batch with explicit 128-row tiles: 3 grid steps, lane-dense output.
    x_big = jax.random.normal(k_x2, (300, state_size), jnp.float32)
    v_big = jax.block_until_ready(critic_forward(x_big, params, tile_b=128))
    ref_big = ref_forward(x_big, params)
    assert v_big.shape == (300, 1), v_big.shape
    assert jnp.allclose(v_big, ref_big, **tol), (
        "mismatch vs reference (grid, tile_b=128)",
        float(jnp.max(jnp.abs(v_big - ref_big))))

    # Default adaptive tiling (multi-step / lane-dense path, padded tail rows).
    x_mid = jax.random.normal(k_x3, (600, state_size), jnp.float32)
    v_mid = jax.block_until_ready(critic_forward(x_mid, params))
    ref_mid = ref_forward(x_mid, params)
    assert v_mid.shape == (600, 1), v_mid.shape
    assert jnp.allclose(v_mid, ref_mid, **tol), (
        "mismatch vs reference (adaptive tiles)",
        float(jnp.max(jnp.abs(v_mid - ref_mid))))

    # evaluate() path (squeeze)
    ev = jax.block_until_ready(critic_evaluate(x_small, params))
    assert ev.shape == (8,), ev.shape

    print("KERNEL_OK")
</pallas_src>

<mosaic_0001>
module attributes {stable_mosaic.version = 11 : i64} {
  func.func @_critic_kernel(%arg0: i32, %arg1: memref<8x32xf32, #tpu.memory_space<vmem>>, %arg2: memref<32x512xbf16, #tpu.memory_space<vmem>>, %arg3: memref<1x512xf32, #tpu.memory_space<vmem>>, %arg4: memref<512x256xbf16, #tpu.memory_space<vmem>>, %arg5: memref<1x256xf32, #tpu.memory_space<vmem>>, %arg6: memref<256x256xbf16, #tpu.memory_space<vmem>>, %arg7: memref<1x256xf32, #tpu.memory_space<vmem>>, %arg8: memref<1x256xf32, #tpu.memory_space<vmem>>, %arg9: memref<1x1xf32, #tpu.memory_space<vmem>>, %arg10: memref<8x1xf32, #tpu.memory_space<vmem>>) attributes {dimension_semantics = [#tpu.dimension_semantics<parallel>], iteration_bounds = array<i64: 1>, scalar_prefetch = 0 : i64, scratch_operands = 0 : i64, tpu.core_type = #tpu.core_type<tc>, window_params = [{transform_indices = @transform_0, window_bounds = array<i64: 8, 32>}, {pipeline_mode = #tpu.pipeline_mode<synchronous>, transform_indices = @transform_1, window_bounds = array<i64: 32, 512>}, {pipeline_mode = #tpu.pipeline_mode<synchronous>, transform_indices = @transform_2, window_bounds = array<i64: 1, 512>}, {pipeline_mode = #tpu.pipeline_mode<synchronous>, transform_indices = @transform_3, window_bounds = array<i64: 512, 256>}, {pipeline_mode = #tpu.pipeline_mode<synchronous>, transform_indices = @transform_4, window_bounds = array<i64: 1, 256>}, {pipeline_mode = #tpu.pipeline_mode<synchronous>, transform_indices = @transform_5, window_bounds = array<i64: 256, 256>}, {pipeline_mode = #tpu.pipeline_mode<synchronous>, transform_indices = @transform_6, window_bounds = array<i64: 1, 256>}, {pipeline_mode = #tpu.pipeline_mode<synchronous>, transform_indices = @transform_7, window_bounds = array<i64: 1, 256>}, {pipeline_mode = #tpu.pipeline_mode<synchronous>, transform_indices = @transform_8, window_bounds = array<i64: 1, 1>}, {transform_indices = @transform_9, window_bounds = array<i64: 8, 1>}]} {
    %c0 = arith.constant 0 : index
    %c0_0 = arith.constant 0 : index
    %0 = vector.load %arg1[%c0, %c0_0] : memref<8x32xf32, #tpu.memory_space<vmem>>, vector<8x32xf32>
    %1 = arith.truncf %0 : vector<8x32xf32> to vector<8x32xbf16>
    %c0_1 = arith.constant 0 : index
    %c0_2 = arith.constant 0 : index
    %2 = vector.load %arg2[%c0_1, %c0_2] : memref<32x512xbf16, #tpu.memory_space<vmem>>, vector<32x512xbf16>
    %cst = arith.constant dense<0.000000e+00> : vector<8x512xf32>
    %3 = tpu.matmul %1, %2, %cst {dimension_numbers = #tpu.dot_dimension_numbers<[1], [0], [0], [1], [0, 0, 1, 1], [], []>} : vector<8x32xbf16>, vector<32x512xbf16>, vector<8x512xf32> -> vector<8x512xf32>
    %c0_3 = arith.constant 0 : index
    %c0_4 = arith.constant 0 : index
    %4 = vector.load %arg3[%c0_3, %c0_4] : memref<1x512xf32, #tpu.memory_space<vmem>>, vector<1x512xf32>
    %5 = vector.broadcast %4 : vector<1x512xf32> to vector<8x512xf32>
    %6 = arith.addf %3, %5 : vector<8x512xf32>
    %7 = arith.truncf %6 : vector<8x512xf32> to vector<8x512xbf16>
    %8 = math.tanh %7 : vector<8x512xbf16>
    %c0_5 = arith.constant 0 : index
    %c0_6 = arith.constant 0 : index
    %9 = vector.load %arg4[%c0_5, %c0_6] : memref<512x256xbf16, #tpu.memory_space<vmem>>, vector<512x256xbf16>
    %cst_7 = arith.constant dense<0.000000e+00> : vector<8x256xf32>
    %10 = tpu.matmul %8, %9, %cst_7 {dimension_numbers = #tpu.dot_dimension_numbers<[1], [0], [0], [1], [0, 0, 1, 1], [], []>} : vector<8x512xbf16>, vector<512x256xbf16>, vector<8x256xf32> -> vector<8x256xf32>
    %c0_8 = arith.constant 0 : index
    %c0_9 = arith.constant 0 : index
    %11 = vector.load %arg5[%c0_8, %c0_9] : memref<1x256xf32, #tpu.memory_space<vmem>>, vector<1x256xf32>
    %12 = vector.broadcast %11 : vector<1x256xf32> to vector<8x256xf32>
    %13 = arith.addf %10, %12 : vector<8x256xf32>
    %14 = arith.truncf %13 : vector<8x256xf32> to vector<8x256xbf16>
    %15 = math.tanh %14 : vector<8x256xbf16>
    %c0_10 = arith.constant 0 : index
    %c0_11 = arith.constant 0 : index
    %16 = vector.load %arg6[%c0_10, %c0_11] : memref<256x256xbf16, #tpu.memory_space<vmem>>, vector<256x256xbf16>
    %cst_12 = arith.constant dense<0.000000e+00> : vector<8x256xf32>
    %17 = tpu.matmul %15, %16, %cst_12 {dimension_numbers = #tpu.dot_dimension_numbers<[1], [0], [0], [1], [0, 0, 1, 1], [], []>} : vector<8x256xbf16>, vector<256x256xbf16>, vector<8x256xf32> -> vector<8x256xf32>
    %c0_13 = arith.constant 0 : index
    %c0_14 = arith.constant 0 : index
    %18 = vector.load %arg7[%c0_13, %c0_14] : memref<1x256xf32, #tpu.memory_space<vmem>>, vector<1x256xf32>
    %19 = vector.broadcast %18 : vector<1x256xf32> to vector<8x256xf32>
    %20 = arith.addf %17, %19 : vector<8x256xf32>
    %21 = arith.truncf %20 : vector<8x256xf32> to vector<8x256xbf16>
    %22 = math.tanh %21 : vector<8x256xbf16>
    %c0_15 = arith.constant 0 : index
    %c0_16 = arith.constant 0 : index
    %23 = vector.load %arg8[%c0_15, %c0_16] : memref<1x256xf32, #tpu.memory_space<vmem>>, vector<1x256xf32>
    %24 = arith.extf %22 : vector<8x256xbf16> to vector<8x256xf32>
    %25 = vector.broadcast %23 : vector<1x256xf32> to vector<8x256xf32>
    %26 = arith.mulf %24, %25 : vector<8x256xf32>
    %cst_17 = arith.constant dense<0.000000e+00> : vector<8xf32>
    %27 = vector.multi_reduction <add>, %26, %cst_17 [1] : vector<8x256xf32> to vector<8xf32>
    %28 = vector.shape_cast %27 : vector<8xf32> to vector<8x1xf32>
    %c0_18 = arith.constant 0 : index
    %c0_19 = arith.constant 0 : index
    %29 = vector.load %arg9[%c0_18, %c0_19] : memref<1x1xf32, #tpu.memory_space<vmem>>, vector<1x1xf32>
    %30 = vector.broadcast %29 : vector<1x1xf32> to vector<8x1xf32>
    %31 = arith.addf %28, %30 : vector<8x1xf32>
    %c0_20 = arith.constant 0 : index
    %c0_21 = arith.constant 0 : index
    %32 = vector.load %arg10[%c0_20, %c0_21] : memref<8x1xf32, #tpu.memory_space<vmem>>, vector<8x1xf32>
    tpu.vector_store %arg10[%c0_20, %c0_21], %31 {strides = array<i32>} : memref<8x1xf32, #tpu.memory_space<vmem>>, vector<8x1xf32>,
    return
  }
  func.func @transform_0(%arg0: i32) -> (i32, i32) {
    %c0_i32 = arith.constant 0 : i32
    %c0_i32_0 = arith.constant 0 : i32
    return %arg0, %c0_i32 : i32, i32
  }
  func.func @transform_1(%arg0: i32) -> (i32, i32) {
    %c0_i32 = arith.constant 0 : i32
    %c0_i32_0 = arith.constant 0 : i32
    %c0_i32_1 = arith.constant 0 : i32
    return %c0_i32, %c0_i32_0 : i32, i32
  }
  func.func @transform_2(%arg0: i32) -> (i32, i32) {
    %c0_i32 = arith.constant 0 : i32
    %c0_i32_0 = arith.constant 0 : i32
    %c0_i32_1 = arith.constant 0 : i32
    return %c0_i32, %c0_i32_0 : i32, i32
  }
  func.func @transform_3(%arg0: i32) -> (i32, i32) {
    %c0_i32 = arith.constant 0 : i32
    %c0_i32_0 = arith.constant 0 : i32
    %c0_i32_1 = arith.constant 0 : i32
    return %c0_i32, %c0_i32_0 : i32, i32
  }
  func.func @transform_4(%arg0: i32) -> (i32, i32) {
    %c0_i32 = arith.constant 0 : i32
    %c0_i32_0 = arith.constant 0 : i32
    %c0_i32_1 = arith.constant 0 : i32
    return %c0_i32, %c0_i32_0 : i32, i32
  }
  func.func @transform_5(%arg0: i32) -> (i32, i32) {
    %c0_i32 = arith.constant 0 : i32
    %c0_i32_0 = arith.constant 0 : i32
    %c0_i32_1 = arith.constant 0 : i32
    return %c0_i32, %c0_i32_0 : i32, i32
  }
  func.func @transform_6(%arg0: i32) -> (i32, i32) {
    %c0_i32 = arith.constant 0 : i32
    %c0_i32_0 = arith.constant 0 : i32
    %c0_i32_1 = arith.constant 0 : i32
    return %c0_i32, %c0_i32_0 : i32, i32
  }
  func.func @transform_7(%arg0: i32) -> (i32, i32) {
    %c0_i32 = arith.constant 0 : i32
    %c0_i32_0 = arith.constant 0 : i32
    %c0_i32_1 = arith.constant 0 : i32
    return %c0_i32, %c0_i32_0 : i32, i32
  }
  func.func @transform_8(%arg0: i32) -> (i32, i32) {
    %c0_i32 = arith.constant 0 : i32
    %c0_i32_0 = arith.constant 0 : i32
    %c0_i32_1 = arith.constant 0 : i32
    return %c0_i32, %c0_i32_0 : i32, i32
  }
  func.func @transform_9(%arg0: i32) -> (i32, i32) {
    %c0_i32 = arith.constant 0 : i32
    %c0_i32_0 = arith.constant 0 : i32
    return %arg0, %c0_i32 : i32, i32
  }
}

</mosaic_0001>

<llo_original>
// kernel: tpu_custom_call.1
$region0: #{tpu_custom_call.1}
  #allocation0 [shape = 'u32[]', space=smem, size = 0x4, offset = 0x4, fixed_abs, tag = 'smem constant byte address 0x4 - core index']
  #allocation1 [shape = 'u32[72,128]{1,0:T(1,128)}', space=vmem, size = 0x9000, scoped, tag = 'internal scratch']
  #allocation2 [shape = 'f32[1,1]{1,0:T(1,128)S(1)}', space=vmem, size = 0x200, scoped, tag = 'scoped memory for tpu_custom_call.1']
  %s0 = inlined_call_operand.hbm [shape: f32[8,32], index: 0, kind: input, shape index: {}]
  %s1 = inlined_call_operand.hbm [shape: bf16[32,512], index: 1, kind: input, shape index: {}]
  %s2 = inlined_call_operand.hbm [shape: f32[1,512], index: 2, kind: input, shape index: {}]
  %s3 = inlined_call_operand.hbm [shape: bf16[512,256], index: 3, kind: input, shape index: {}]
  %s4 = inlined_call_operand.vmem [shape: f32[1,256], index: 4, kind: input, shape index: {}]
  %s5 = inlined_call_operand.hbm [shape: bf16[256,256], index: 5, kind: input, shape index: {}]
  %s6 = inlined_call_operand.vmem [shape: f32[1,256], index: 6, kind: input, shape index: {}]
  %s7 = inlined_call_operand.vmem [shape: f32[1,256], index: 7, kind: input, shape index: {}]
  %s8 = inlined_call_operand.<no memory space> [shape: f32[1,1], index: 8, kind: input, shape index: {}]
  %s9 = inlined_call_operand.vmem [shape: f32[8,1], index: 9, kind: output, shape index: {}]
  %s10 = sld [smem:[#allocation0]]
  $region66: #{tpu_custom_call.1} parent=0
    _
  %s12 = ssub.s32 1, %s10
  %s13 = scalar_select 0, %s12, %s10
  %v14 = vstv %s8
  %15 = vst [vmem:[#allocation2] sm:$0x1] %v14
  $region1: #{tpu_custom_call.1} parent=0
    #allocation3 [shape = 'u8[4096]{0}', space=vmem, size = 0x1000, scoped, tag = 'input window, operand 0, single buffered']
    #allocation4 [shape = 's32[1]{0}', space=sflag, size = 0x4, scoped, tag = 'scoped memory for tpu_custom_call.1']
    #allocation5 [shape = 'u8[32768]{0}', space=vmem, size = 0x8000, scoped, tag = 'input window, operand 1, single buffered']
    #allocation6 [shape = 's32[1]{0}', space=sflag, size = 0x4, scoped, tag = 'scoped memory for tpu_custom_call.1']
    #allocation7 [shape = 'u8[2048]{0}', space=vmem, size = 0x800, scoped, tag = 'input window, operand 2, single buffered']
    #allocation8 [shape = 'u8[262144]{0}', space=vmem, size = 0x40000, scoped, tag = 'input window, operand 3, single buffered']
    #allocation9 [shape = 's32[1]{0}', space=sflag, size = 0x4, scoped, tag = 'scoped memory for tpu_custom_call.1']
    #allocation10 [shape = 'u8[131072]{0}', space=vmem, size = 0x20000, scoped, tag = 'input window, operand 5, single buffered']
    %16 = vsyncpa [#allocation4], 0
    %17 = vsyncpa [#allocation6], 0
    %18 = vsyncpa [#allocation9], 0
    // Predicated region
    $region2: #{tpu_custom_call.1} parent=1 // pred_check
      _
    $region3: #{tpu_custom_call.1} parent=1 // pred_check_branch
      %20 = sbr.rel (0) target = $region5
    $region4: #{tpu_custom_call.1} parent=1 // pred_region
      %22 = vsyncadd [#allocation4], 0
      %s24 = sshll.u32 %s0, 4
      %s25 = int_to_ptr.hbm [resolvable:$true] %s24
      %s26 = sshll.u32 [#allocation3], 4
      %s27 = int_to_ptr.vmem [resolvable:$true] %s26
      %29 = dma.hbm_to_vmem [thread:$0]  %s25, 128, %s27, [#allocation4]
    $region5: #{tpu_custom_call.1} parent=1 // pred_fallthru
      _
    // Predicated region
    $region6: #{tpu_custom_call.1} parent=1 // pred_check
      _
    $region7: #{tpu_custom_call.1} parent=1 // pred_check_branch
      %31 = sbr.rel (0) target = $region9
    $region8: #{tpu_custom_call.1} parent=1 // pred_region
      %33 = vsyncadd [#allocation6], 0
      %s34 = sshll.u32 %s1, 4
      %s35 = int_to_ptr.hbm [resolvable:$true] %s34
      %s36 = sshll.u32 [#allocation5], 4
      %s37 = int_to_ptr.vmem [resolvable:$true] %s36
      %42 = dma.hbm_to_vmem [thread:$0]  %s35, 1024, %s37, [#allocation6], 256, 256, 16
    $region9: #{tpu_custom_call.1} parent=1 // pred_fallthru
      _
    // Predicated region
    $region10: #{tpu_custom_call.1} parent=1 // pred_check
      _
    $region11: #{tpu_custom_call.1} parent=1 // pred_check_branch
      %44 = sbr.rel (0) target = $region13
    $region12: #{tpu_custom_call.1} parent=1 // pred_region
      %46 = vsyncadd [#allocation6], 0
      %s48 = sshll.u32 %s2, 4
      %s49 = int_to_ptr.hbm [resolvable:$true] %s48
      %s50 = sshll.u32 [#allocation7], 4
      %s51 = int_to_ptr.vmem [resolvable:$true] %s50
      %53 = dma.hbm_to_vmem [thread:$0]  %s49, 64, %s51, [#allocation6]
    $region13: #{tpu_custom_call.1} parent=1 // pred_fallthru
      _
    // Predicated region
    $region14: #{tpu_custom_call.1} parent=1 // pred_check
      _
    $region15: #{tpu_custom_call.1} parent=1 // pred_check_branch
      %55 = sbr.rel (0) target = $region17
    $region16: #{tpu_custom_call.1} parent=1 // pred_region
      %57 = vsyncadd [#allocation9], 0
      %s58 = sshll.u32 %s3, 4
      %s59 = int_to_ptr.hbm [resolvable:$true] %s58
      %s60 = sshll.u32 [#allocation8], 4
      %s61 = int_to_ptr.vmem [resolvable:$true] %s60
      %66 = dma.hbm_to_vmem [thread:$0]  %s59, 8192, %s61, [#allocation9], 128, 128, 8
    $region17: #{tpu_custom_call.1} parent=1 // pred_fallthru
      _
    // Predicated region
    $region18: #{tpu_custom_call.1} parent=1 // pred_check
      _
    $region19: #{tpu_custom_call.1} parent=1 // pred_check_branch
      %68 = sbr.rel (0) target = $region21
    $region20: #{tpu_custom_call.1} parent=1 // pred_region
      _
    $region21: #{tpu_custom_call.1} parent=1 // pred_fallthru
      _
    // Predicated region
    $region22: #{tpu_custom_call.1} parent=1 // pred_check
      _
    $region23: #{tpu_custom_call.1} parent=1 // pred_check_branch
      %70 = sbr.rel (0) target = $region25
    $region24: #{tpu_custom_call.1} parent=1 // pred_region
      %72 = vsyncadd [#allocation9], 0
      %s73 = sshll.u32 %s5, 4
      %s74 = int_to_ptr.hbm [resolvable:$true] %s73
      %s75 = sshll.u32 [#allocation10], 4
      %s76 = int_to_ptr.vmem [resolvable:$true] %s75
      %81 = dma.hbm_to_vmem [thread:$0]  %s74, 4096, %s76, [#allocation9], 128, 128, 8
    $region25: #{tpu_custom_call.1} parent=1 // pred_fallthru
      _
    // Predicated region
    $region26: #{tpu_custom_call.1} parent=1 // pred_check
      _
    $region27: #{tpu_custom_call.1} parent=1 // pred_check_branch
      %83 = sbr.rel (0) target = $region29
    $region28: #{tpu_custom_call.1} parent=1 // pred_region
      _
    $region29: #{tpu_custom_call.1} parent=1 // pred_fallthru
      _
    // Predicated region
    $region30: #{tpu_custom_call.1} parent=1 // pred_check
      _
    $region31: #{tpu_custom_call.1} parent=1 // pred_check_branch
      %85 = sbr.rel (0) target = $region33
    $region32: #{tpu_custom_call.1} parent=1 // pred_region
      _
    $region33: #{tpu_custom_call.1} parent=1 // pred_fallthru
      _
    // Predicated region
    $region34: #{tpu_custom_call.1} parent=1 // pred_check
      _
    $region35: #{tpu_custom_call.1} parent=1 // pred_check_branch
      %87 = sbr.rel (0) target = $region37
    $region36: #{tpu_custom_call.1} parent=1 // pred_region
      _
    $region37: #{tpu_custom_call.1} parent=1 // pred_fallthru
      _
    // Predicated region
    $region38: #{tpu_custom_call.1} parent=1 // pred_check
      _
    $region39: #{tpu_custom_call.1} parent=1 // pred_check_branch
      %89 = sbr.rel (0) target = $region41
    $region40: #{tpu_custom_call.1} parent=1 // pred_region
      %91 = dma.done [#allocation4], 128
    $region41: #{tpu_custom_call.1} parent=1 // pred_fallthru
      _
    // Predicated region
    $region42: #{tpu_custom_call.1} parent=1 // pred_check
      _
    $region43: #{tpu_custom_call.1} parent=1 // pred_check_branch
      %93 = sbr.rel (0) target = $region45
    $region44: #{tpu_custom_call.1} parent=1 // pred_region
      %95 = dma.done [#allocation6], 1024
    $region45: #{tpu_custom_call.1} parent=1 // pred_fallthru
      _
    // Predicated region
    $region46: #{tpu_custom_call.1} parent=1 // pred_check
      _
    $region47: #{tpu_custom_call.1} parent=1 // pred_check_branch
      %97 = sbr.rel (0) target = $region49
    $region48: #{tpu_custom_call.1} parent=1 // pred_region
      %99 = dma.done [#allocation6], 64
    $region49: #{tpu_custom_call.1} parent=1 // pred_fallthru
      _
    // Predicated region
    $region50: #{tpu_custom_call.1} parent=1 // pred_check
      _
    $region51: #{tpu_custom_call.1} parent=1 // pred_check_branch
      %101 = sbr.rel (0) target = $region53
    $region52: #{tpu_custom_call.1} parent=1 // pred_region
      %103 = dma.done [#allocation9], 8192
    $region53: #{tpu_custom_call.1} parent=1 // pred_fallthru
      _
    // Predicated region
    $region54: #{tpu_custom_call.1} parent=1 // pred_check
      _
    $region55: #{tpu_custom_call.1} parent=1 // pred_check_branch
      %105 = sbr.rel (0) target = $region57
    $region56: #{tpu_custom_call.1} parent=1 // pred_region
      %107 = dma.done [#allocation9], 4096
    $region57: #{tpu_custom_call.1} parent=1 // pred_fallthru
      _
    %v109 = vld [vmem:[#allocation3] sm:$0xff]
    %v110 = vpack.c.bf16 %v109, %v109
    %v111 = vld [vmem:[#allocation5] sm:$0xff]
    %v112 = vld [vmem:[#allocation5 + $0x8] sm:$0xff]
    %v113 = vld [vmem:[#allocation5 + $0x10] sm:$0xff]
    %v114 = vld [vmem:[#allocation5 + $0x18] sm:$0xff]
    %v115 = vld [vmem:[#allocation5 + $0x20] sm:$0xff]
    %v116 = vld [vmem:[#allocation5 + $0x28] sm:$0xff]
    %v117 = vld [vmem:[#allocation5 + $0x30] sm:$0xff]
    %v118 = vld [vmem:[#allocation5 + $0x38] sm:$0xff]
    %v119 = vld [vmem:[#allocation7] sm:$0xf]
    %v121 = vperm.slane %v119, 0
    %v122 = vperm.slane %v119, 1
    %v123 = vperm.slane %v119, 2
    %v124 = vperm.slane %v119, 3
    %v137 = vunpack.c.l.b16 %v111
    %v138 = vunpack.c.h.b16 %v111
    %v139 = vunpack.c.l.b16 %v112
    %v140 = vunpack.c.h.b16 %v112
    %v141 = vunpack.c.l.b16 %v113
    %v142 = vunpack.c.h.b16 %v113
    %v143 = vunpack.c.l.b16 %v114
    %v144 = vunpack.c.h.b16 %v114
    %v145 = vunpack.c.l.b16 %v115
    %v146 = vunpack.c.h.b16 %v115
    %v147 = vunpack.c.l.b16 %v116
    %v148 = vunpack.c.h.b16 %v116
    %v149 = vunpack.c.l.b16 %v117
    %v150 = vunpack.c.h.b16 %v117
    %v151 = vunpack.c.l.b16 %v118
    %v152 = vunpack.c.h.b16 %v118
    %v153 = vpack.c.b16 %v141, %v137
    %v154 = vpack.c.b16 %v142, %v138
    %v155 = vpack.c.b16 %v143, %v139
    %v156 = vpack.c.b16 %v144, %v140
    %v157 = vpack.c.b16 %v149, %v145
    %v158 = vpack.c.b16 %v150, %v146
    %v159 = vpack.c.b16 %v151, %v147
    %v160 = vpack.c.b16 %v152, %v148
    %vm169 = vcmask 261120
    %v171 = vsel %vm169, %v110, 0
    %173 = vmatpush.bf16.msra.mxu0 0
    %174 = vmatpush.bf16.msra.mxu0 0
    %175 = vmatpush.bf16.msra.mxu0 0
    %176 = vmatpush.bf16.msra.mxu0 0
    %177 = vmatpush.bf16.msra.mxu0 0
    %178 = vmatpush.bf16.msra.mxu0 0
    %179 = vmatpush.bf16.msra.mxu0 %v157
    %180 = vmatpush.bf16.msra.mxu0 %v153
    %181 = vmatmul.bf16.gmra.mxu0 %v171
    %v182 = vpop.f32.mrf.mxu0
    %v183 = vadd.f32 %v121, %v182
    %v184 = vpop.f32.mrf.mxu0
    %185 = vdwg.mxu0
    %186 = vmatpush.bf16.msra.mxu0 0
    %187 = vmatpush.bf16.msra.mxu0 0
    %188 = vmatpush.bf16.msra.mxu0 0
    %189 = vmatpush.bf16.msra.mxu0 0
    %190 = vmatpush.bf16.msra.mxu0 0
    %191 = vmatpush.bf16.msra.mxu0 0
    %192 = vmatpush.bf16.msra.mxu0 %v158
    %193 = vmatpush.bf16.msra.mxu0 %v154
    %194 = vmatmul.bf16.gmra.mxu0 %v171
    %v195 = vpop.f32.mrf.mxu0
    %v196 = vadd.f32 %v122, %v195
    %v197 = vpop.f32.mrf.mxu0
    %198 = vdwg.mxu0
    %199 = vmatpush.bf16.msra.mxu0 0
    %200 = vmatpush.bf16.msra.mxu0 0
    %201 = vmatpush.bf16.msra.mxu0 0
    %202 = vmatpush.bf16.msra.mxu0 0
    %203 = vmatpush.bf16.msra.mxu0 0
    %204 = vmatpush.bf16.msra.mxu0 0
    %205 = vmatpush.bf16.msra.mxu0 %v159
    %206 = vmatpush.bf16.msra.mxu0 %v155
    %207 = vmatmul.bf16.gmra.mxu0 %v171
    %v208 = vpop.f32.mrf.mxu0
    %v209 = vadd.f32 %v123, %v208
    %v210 = vpop.f32.mrf.mxu0
    %211 = vdwg.mxu0
    %212 = vmatpush.bf16.msra.mxu0 0
    %213 = vmatpush.bf16.msra.mxu0 0
    %214 = vmatpush.bf16.msra.mxu0 0
    %215 = vmatpush.bf16.msra.mxu0 0
    %216 = vmatpush.bf16.msra.mxu0 0
    %217 = vmatpush.bf16.msra.mxu0 0
    %218 = vmatpush.bf16.msra.mxu0 %v160
    %219 = vmatpush.bf16.msra.mxu0 %v156
    %220 = vmatmul.bf16.gmra.mxu0 %v171
    %v221 = vpop.f32.mrf.mxu0
    %v222 = vadd.f32 %v124, %v221
    %v223 = vpop.f32.mrf.mxu0
    %224 = vdwg.mxu0
    %v225 = vpack.c.bf16 %v183, %v183
    %v226 = vpack.c.bf16 %v196, %v196
    %v227 = vpack.c.bf16 %v209, %v209
    %v228 = vpack.c.bf16 %v222, %v222
    %v229 = vunpack.c.l.bf16 %v225
    %v230 = vunpack.c.l.bf16 %v226
    %v231 = vunpack.c.l.bf16 %v227
    %v232 = vunpack.c.l.bf16 %v228
    %v233 = vtanh.pop %v229
    %v234 = vtanh.pop %v230
    %v235 = vtanh.pop %v231
    %v236 = vtanh.pop %v232
    %v237 = vpack.c.bf16 %v233, %v233
    %v238 = vpack.c.bf16 %v234, %v234
    %v239 = vpack.c.bf16 %v235, %v235
    %v240 = vpack.c.bf16 %v236, %v236
    %v241 = vld [vmem:[#allocation8] sm:$0xff]
    %v242 = vld [vmem:[#allocation8 + $0x8] sm:$0xff]
    %v243 = vld [vmem:[#allocation8 + $0x10] sm:$0xff]
    %v244 = vld [vmem:[#allocation8 + $0x18] sm:$0xff]
    %v245 = vld [vmem:[#allocation8 + $0x20] sm:$0xff]
    %v246 = vld [vmem:[#allocation8 + $0x28] sm:$0xff]
    %v247 = vld [vmem:[#allocation8 + $0x30] sm:$0xff]
    %v248 = vld [vmem:[#allocation8 + $0x38] sm:$0xff]
    %v249 = vld [vmem:[#allocation8 + $0x40] sm:$0xff]
    %v250 = vld [vmem:[#allocation8 + $0x48] sm:$0xff]
    %v251 = vld [vmem:[#allocation8 + $0x50] sm:$0xff]
    %v252 = vld [vmem:[#allocation8 + $0x58] sm:$0xff]
    %v253 = vld [vmem:[#allocation8 + $0x60] sm:$0xff]
    %v254 = vld [vmem:[#allocation8 + $0x68] sm:$0xff]
    %v255 = vld [vmem:[#allocation8 + $0x70] sm:$0xff]
    %v256 = vld [vmem:[#allocation8 + $0x78] sm:$0xff]
    %v257 = vld [vmem:[#allocation8 + $0x80] sm:$0xff]
    %v258 = vld [vmem:[#allocation8 + $0x88] sm:$0xff]
    %v259 = vld [vmem:[#allocation8 + $0x90] sm:$0xff]
    %v260 = vld [vmem:[#allocation8 + $0x98] sm:$0xff]
    %v261 = vld [vmem:[#allocation8 + $0xa0] sm:$0xff]
    %v262 = vld [vmem:[#allocation8 + $0xa8] sm:$0xff]
    %v263 = vld [vmem:[#allocation8 + $0xb0] sm:$0xff]
    %v264 = vld [vmem:[#allocation8 + $0xb8] sm:$0xff]
    %v265 = vld [vmem:[#allocation8 + $0xc0] sm:$0xff]
    %v266 = vld [vmem:[#allocation8 + $0xc8] sm:$0xff]
    %v267 = vld [vmem:[#allocation8 + $0xd0] sm:$0xff]
    %v268 = vld [vmem:[#allocation8 + $0xd8] sm:$0xff]
    %v269 = vld [vmem:[#allocation8 + $0xe0] sm:$0xff]
    %v270 = vld [vmem:[#allocation8 + $0xe8] sm:$0xff]
    %v271 = vld [vmem:[#allocation8 + $0xf0] sm:$0xff]
    %v272 = vld [vmem:[#allocation8 + $0xf8] sm:$0xff]
    %v273 = vld [vmem:[#allocation8 + $0x100] sm:$0xff]
    %v274 = vld [vmem:[#allocation8 + $0x108] sm:$0xff]
    %v275 = vld [vmem:[#allocation8 + $0x110] sm:$0xff]
    %v276 = vld [vmem:[#allocation8 + $0x118] sm:$0xff]
    %v277 = vld [vmem:[#allocation8 + $0x120] sm:$0xff]
    %v278 = vld [vmem:[#allocation8 + $0x128] sm:$0xff]
    %v279 = vld [vmem:[#allocation8 + $0x130] sm:$0xff]
    %v280 = vld [vmem:[#allocation8 + $0x138] sm:$0xff]
    %v281 = vld [vmem:[#allocation8 + $0x140] sm:$0xff]
    %v282 = vld [vmem:[#allocation8 + $0x148] sm:$0xff]
    %v283 = vld [vmem:[#allocation8 + $0x150] sm:$0xff]
    %v284 = vld [vmem:[#allocation8 + $0x158] sm:$0xff]
    %v285 = vld [vmem:[#allocation8 + $0x160] sm:$0xff]
    %v286 = vld [vmem:[#allocation8 + $0x168] sm:$0xff]
    %v287 = vld [vmem:[#allocation8 + $0x170] sm:$0xff]
    %v288 = vld [vmem:[#allocation8 + $0x178] sm:$0xff]
    %v289 = vld [vmem:[#allocation8 + $0x180] sm:$0xff]
    %v290 = vld [vmem:[#allocation8 + $0x188] sm:$0xff]
    %v291 = vld [vmem:[#allocation8 + $0x190] sm:$0xff]
    %v292 = vld [vmem:[#allocation8 + $0x198] sm:$0xff]
    %v293 = vld [vmem:[#allocation8 + $0x1a0] sm:$0xff]
    %v294 = vld [vmem:[#allocation8 + $0x1a8] sm:$0xff]
    %v295 = vld [vmem:[#allocation8 + $0x1b0] sm:$0xff]
    %v296 = vld [vmem:[#allocation8 + $0x1b8] sm:$0xff]
    %v297 = vld [vmem:[#allocation8 + $0x1c0] sm:$0xff]
    %v298 = vld [vmem:[#allocation8 + $0x1c8] sm:$0xff]
    %v299 = vld [vmem:[#allocation8 + $0x1d0] sm:$0xff]
    %v300 = vld [vmem:[#allocation8 + $0x1d8] sm:$0xff]
    %v301 = vld [vmem:[#allocation8 + $0x1e0] sm:$0xff]
    %v302 = vld [vmem:[#allocation8 + $0x1e8] sm:$0xff]
    %v303 = vld [vmem:[#allocation8 + $0x1f0] sm:$0xff]
    %v304 = vld [vmem:[#allocation8 + $0x1f8] sm:$0xff]
    %v305 = vld [vmem:[%s4] sm:$0x3]
    %v307 = vperm.slane %v305, 0
    %v308 = vperm.slane %v305, 1
    %v375 = vunpack.c.l.b16 %v241
    %v376 = vunpack.c.h.b16 %v241
    %v377 = vunpack.c.l.b16 %v242
    %v378 = vunpack.c.h.b16 %v242
    %v379 = vunpack.c.l.b16 %v243
    %v380 = vunpack.c.h.b16 %v243
    %v381 = vunpack.c.l.b16 %v244
    %v382 = vunpack.c.h.b16 %v244
    %v383 = vunpack.c.l.b16 %v245
    %v384 = vunpack.c.h.b16 %v245
    %v385 = vunpack.c.l.b16 %v246
    %v386 = vunpack.c.h.b16 %v246
    %v387 = vunpack.c.l.b16 %v247
    %v388 = vunpack.c.h.b16 %v247
    %v389 = vunpack.c.l.b16 %v248
    %v390 = vunpack.c.h.b16 %v248
    %v391 = vunpack.c.l.b16 %v249
    %v392 = vunpack.c.h.b16 %v249
    %v393 = vunpack.c.l.b16 %v250
    %v394 = vunpack.c.h.b16 %v250
    %v395 = vunpack.c.l.b16 %v251
    %v396 = vunpack.c.h.b16 %v251
    %v397 = vunpack.c.l.b16 %v252
    %v398 = vunpack.c.h.b16 %v252
    %v399 = vunpack.c.l.b16 %v253
    %v400 = vunpack.c.h.b16 %v253
    %v401 = vunpack.c.l.b16 %v254
    %v402 = vunpack.c.h.b16 %v254
    %v403 = vunpack.c.l.b16 %v255
    %v404 = vunpack.c.h.b16 %v255
    %v405 = vunpack.c.l.b16 %v256
    %v406 = vunpack.c.h.b16 %v256
    %v407 = vunpack.c.l.b16 %v257
    %v408 = vunpack.c.h.b16 %v257
    %v409 = vunpack.c.l.b16 %v258
    %v410 = vunpack.c.h.b16 %v258
    %v411 = vunpack.c.l.b16 %v259
    %v412 = vunpack.c.h.b16 %v259
    %v413 = vunpack.c.l.b16 %v260
    %v414 = vunpack.c.h.b16 %v260
    %v415 = vunpack.c.l.b16 %v261
    %v416 = vunpack.c.h.b16 %v261
    %v417 = vunpack.c.l.b16 %v262
    %v418 = vunpack.c.h.b16 %v262
    %v419 = vunpack.c.l.b16 %v263
    %v420 = vunpack.c.h.b16 %v263
    %v421 = vunpack.c.l.b16 %v264
    %v422 = vunpack.c.h.b16 %v264
    %v423 = vunpack.c.l.b16 %v265
    %v424 = vunpack.c.h.b16 %v265
    %v425 = vunpack.c.l.b16 %v266
    %v426 = vunpack.c.h.b16 %v266
    %v427 = vunpack.c.l.b16 %v267
    %v428 = vunpack.c.h.b16 %v267
    %v429 = vunpack.c.l.b16 %v268
    %v430 = vunpack.c.h.b16 %v268
    %v431 = vunpack.c.l.b16 %v269
    %v432 = vunpack.c.h.b16 %v269
    %v433 = vunpack.c.l.b16 %v270
    %v434 = vunpack.c.h.b16 %v270
    %v435 = vunpack.c.l.b16 %v271
    %v436 = vunpack.c.h.b16 %v271
    %v437 = vunpack.c.l.b16 %v272
    %v438 = vunpack.c.h.b16 %v272
    %v439 = vunpack.c.l.b16 %v273
    %v440 = vunpack.c.h.b16 %v273
    %v441 = vunpack.c.l.b16 %v274
    %v442 = vunpack.c.h.b16 %v274
    %v443 = vunpack.c.l.b16 %v275
    %v444 = vunpack.c.h.b16 %v275
    %v445 = vunpack.c.l.b16 %v276
    %v446 = vunpack.c.h.b16 %v276
    %v447 = vunpack.c.l.b16 %v277
    %v448 = vunpack.c.h.b16 %v277
    %v449 = vunpack.c.l.b16 %v278
    %v450 = vunpack.c.h.b16 %v278
    %v451 = vunpack.c.l.b16 %v279
    %v452 = vunpack.c.h.b16 %v279
    %v453 = vunpack.c.l.b16 %v280
    %v454 = vunpack.c.h.b16 %v280
    %v455 = vunpack.c.l.b16 %v281
    %v456 = vunpack.c.h.b16 %v281
    %v457 = vunpack.c.l.b16 %v282
    %v458 = vunpack.c.h.b16 %v282
    %v459 = vunpack.c.l.b16 %v283
    %v460 = vunpack.c.h.b16 %v283
    %v461 = vunpack.c.l.b16 %v284
    %v462 = vunpack.c.h.b16 %v284
    %v463 = vunpack.c.l.b16 %v285
    %v464 = vunpack.c.h.b16 %v285
    %v465 = vunpack.c.l.b16 %v286
    %v466 = vunpack.c.h.b16 %v286
    %v467 = vunpack.c.l.b16 %v287
    %v468 = vunpack.c.h.b16 %v287
    %v469 = vunpack.c.l.b16 %v288
    %v470 = vunpack.c.h.b16 %v288
    %v471 = vunpack.c.l.b16 %v289
    %v472 = vunpack.c.h.b16 %v289
    %v473 = vunpack.c.l.b16 %v290
    %v474 = vunpack.c.h.b16 %v290
    %v475 = vunpack.c.l.b16 %v291
    %v476 = vunpack.c.h.b16 %v291
    %v477 = vunpack.c.l.b16 %v292
    %v478 = vunpack.c.h.b16 %v292
    %v479 = vunpack.c.l.b16 %v293
    %v480 = vunpack.c.h.b16 %v293
    %v481 = vunpack.c.l.b16 %v294
    %v482 = vunpack.c.h.b16 %v294
    %v483 = vunpack.c.l.b16 %v295
    %v484 = vunpack.c.h.b16 %v295
    %v485 = vunpack.c.l.b16 %v296
    %v486 = vunpack.c.h.b16 %v296
    %v487 = vunpack.c.l.b16 %v297
    %v488 = vunpack.c.h.b16 %v297
    %v489 = vunpack.c.l.b16 %v298
    %v490 = vunpack.c.h.b16 %v298
    %v491 = vunpack.c.l.b16 %v299
    %v492 = vunpack.c.h.b16 %v299
    %v493 = vunpack.c.l.b16 %v300
    %v494 = vunpack.c.h.b16 %v300
    %v495 = vunpack.c.l.b16 %v301
    %v496 = vunpack.c.h.b16 %v301
    %v497 = vunpack.c.l.b16 %v302
    %v498 = vunpack.c.h.b16 %v302
    %v499 = vunpack.c.l.b16 %v303
    %v500 = vunpack.c.h.b16 %v303
    %v501 = vunpack.c.l.b16 %v304
    %v502 = vunpack.c.h.b16 %v304
    %v503 = vpack.c.b16 %v377, %v375
    %v504 = vpack.c.b16 %v378, %v376
    %v505 = vpack.c.b16 %v381, %v379
    %v506 = vpack.c.b16 %v382, %v380
    %v507 = vpack.c.b16 %v385, %v383
    %v508 = vpack.c.b16 %v386, %v384
    %v509 = vpack.c.b16 %v389, %v387
    %v510 = vpack.c.b16 %v390, %v388
    %v511 = vpack.c.b16 %v393, %v391
    %v512 = vpack.c.b16 %v394, %v392
    %v513 = vpack.c.b16 %v397, %v395
    %v514 = vpack.c.b16 %v398, %v396
    %v515 = vpack.c.b16 %v401, %v399
    %v516 = vpack.c.b16 %v402, %v400
    %v517 = vpack.c.b16 %v405, %v403
    %v518 = vpack.c.b16 %v406, %v404
    %v519 = vpack.c.b16 %v409, %v407
    %v520 = vpack.c.b16 %v410, %v408
    %v521 = vpack.c.b16 %v413, %v411
    %v522 = vpack.c.b16 %v414, %v412
    %v523 = vpack.c.b16 %v417, %v415
    %v524 = vpack.c.b16 %v418, %v416
    %v525 = vpack.c.b16 %v421, %v419
    %v526 = vpack.c.b16 %v422, %v420
    %v527 = vpack.c.b16 %v425, %v423
    %v528 = vpack.c.b16 %v426, %v424
    %v529 = vpack.c.b16 %v429, %v427
    %v530 = vpack.c.b16 %v430, %v428
    %v531 = vpack.c.b16 %v433, %v431
    %v532 = vpack.c.b16 %v434, %v432
    %v533 = vpack.c.b16 %v437, %v435
    %v534 = vpack.c.b16 %v438, %v436
    %v535 = vpack.c.b16 %v441, %v439
    %v536 = vpack.c.b16 %v442, %v440
    %v537 = vpack.c.b16 %v445, %v443
    %v538 = vpack.c.b16 %v446, %v444
    %v539 = vpack.c.b16 %v449, %v447
    %v540 = vpack.c.b16 %v450, %v448
    %v541 = vpack.c.b16 %v453, %v451
    %v542 = vpack.c.b16 %v454, %v452
    %v543 = vpack.c.b16 %v457, %v455
    %v544 = vpack.c.b16 %v458, %v456
    %v545 = vpack.c.b16 %v461, %v459
    %v546 = vpack.c.b16 %v462, %v460
    %v547 = vpack.c.b16 %v465, %v463
    %v548 = vpack.c.b16 %v466, %v464
    %v549 = vpack.c.b16 %v469, %v467
    %v550 = vpack.c.b16 %v470, %v468
    %v551 = vpack.c.b16 %v473, %v471
    %v552 = vpack.c.b16 %v474, %v472
    %v553 = vpack.c.b16 %v477, %v475
    %v554 = vpack.c.b16 %v478, %v476
    %v555 = vpack.c.b16 %v481, %v479
    %v556 = vpack.c.b16 %v482, %v480
    %v557 = vpack.c.b16 %v485, %v483
    %v558 = vpack.c.b16 %v486, %v484
    %v559 = vpack.c.b16 %v489, %v487
    %v560 = vpack.c.b16 %v490, %v488
    %v561 = vpack.c.b16 %v493, %v491
    %v562 = vpack.c.b16 %v494, %v492
    %v563 = vpack.c.b16 %v497, %v495
    %v564 = vpack.c.b16 %v498, %v496
    %v565 = vpack.c.b16 %v501, %v499
    %v566 = vpack.c.b16 %v502, %v500
    %631 = vmatpush.bf16.msra.mxu0 %v517
    %632 = vmatpush.bf16.msra.mxu0 %v515
    %633 = vmatpush.bf16.msra.mxu0 %v513
    %634 = vmatpush.bf16.msra.mxu0 %v511
    %635 = vmatpush.bf16.msra.mxu0 %v509
    %636 = vmatpush.bf16.msra.mxu0 %v507
    %637 = vmatpush.bf16.msra.mxu0 %v505
    %638 = vmatpush.bf16.msra.mxu0 %v503
    %639 = vmatmul.bf16.gmra.mxu0 %v237
    %v640 = vpop.f32.mrf.mxu0
    %v641 = vadd.f32 %v307, %v640
    %v642 = vpop.f32.mrf.mxu0
    %643 = vdwg.mxu0
    %644 = vmatpush.bf16.msra.mxu0 %v533
    %645 = vmatpush.bf16.msra.mxu0 %v531
    %646 = vmatpush.bf16.msra.mxu0 %v529
    %647 = vmatpush.bf16.msra.mxu0 %v527
    %648 = vmatpush.bf16.msra.mxu0 %v525
    %649 = vmatpush.bf16.msra.mxu0 %v523
    %650 = vmatpush.bf16.msra.mxu0 %v521
    %651 = vmatpush.bf16.msra.mxu0 %v519
    %652 = vmatmul.bf16.gmra.mxu0 %v238
    %v653 = vpop.f32.mrf.mxu0
    %v654 = vadd.f32 %v641, %v653
    %v655 = vpop.f32.mrf.mxu0
    %656 = vdwg.mxu0
    %657 = vmatpush.bf16.msra.mxu0 %v549
    %658 = vmatpush.bf16.msra.mxu0 %v547
    %659 = vmatpush.bf16.msra.mxu0 %v545
    %660 = vmatpush.bf16.msra.mxu0 %v543
    %661 = vmatpush.bf16.msra.mxu0 %v541
    %662 = vmatpush.bf16.msra.mxu0 %v539
    %663 = vmatpush.bf16.msra.mxu0 %v537
    %664 = vmatpush.bf16.msra.mxu0 %v535
    %665 = vmatmul.bf16.gmra.mxu0 %v239
    %v666 = vpop.f32.mrf.mxu0
    %v667 = vadd.f32 %v654, %v666
    %v668 = vpop.f32.mrf.mxu0
    %669 = vdwg.mxu0
    %670 = vmatpush.bf16.msra.mxu0 %v565
    %671 = vmatpush.bf16.msra.mxu0 %v563
    %672 = vmatpush.bf16.msra.mxu0 %v561
    %673 = vmatpush.bf16.msra.mxu0 %v559
    %674 = vmatpush.bf16.msra.mxu0 %v557
    %675 = vmatpush.bf16.msra.mxu0 %v555
    %676 = vmatpush.bf16.msra.mxu0 %v553
    %677 = vmatpush.bf16.msra.mxu0 %v551
    %678 = vmatmul.bf16.gmra.mxu0 %v240
    %v679 = vpop.f32.mrf.mxu0
    %v680 = vadd.f32 %v667, %v679
    %v681 = vpop.f32.mrf.mxu0
    %682 = vdwg.mxu0
    %683 = vmatpush.bf16.msra.mxu0 %v518
    %684 = vmatpush.bf16.msra.mxu0 %v516
    %685 = vmatpush.bf16.msra.mxu0 %v514
    %686 = vmatpush.bf16.msra.mxu0 %v512
    %687 = vmatpush.bf16.msra.mxu0 %v510
    %688 = vmatpush.bf16.msra.mxu0 %v508
    %689 = vmatpush.bf16.msra.mxu0 %v506
    %690 = vmatpush.bf16.msra.mxu0 %v504
    %691 = vmatmul.bf16.gmra.mxu0 %v237
    %v692 = vpop.f32.mrf.mxu0
    %v693 = vadd.f32 %v308, %v692
    %v694 = vpop.f32.mrf.mxu0
    %695 = vdwg.mxu0
    %696 = vmatpush.bf16.msra.mxu0 %v534
    %697 = vmatpush.bf16.msra.mxu0 %v532
    %698 = vmatpush.bf16.msra.mxu0 %v530
    %699 = vmatpush.bf16.msra.mxu0 %v528
    %700 = vmatpush.bf16.msra.mxu0 %v526
    %701 = vmatpush.bf16.msra.mxu0 %v524
    %702 = vmatpush.bf16.msra.mxu0 %v522
    %703 = vmatpush.bf16.msra.mxu0 %v520
    %704 = vmatmul.bf16.gmra.mxu0 %v238
    %v705 = vpop.f32.mrf.mxu0
    %v706 = vadd.f32 %v693, %v705
    %v707 = vpop.f32.mrf.mxu0
    %708 = vdwg.mxu0
    %709 = vmatpush.bf16.msra.mxu0 %v550
    %710 = vmatpush.bf16.msra.mxu0 %v548
    %711 = vmatpush.bf16.msra.mxu0 %v546
    %712 = vmatpush.bf16.msra.mxu0 %v544
    %713 = vmatpush.bf16.msra.mxu0 %v542
    %714 = vmatpush.bf16.msra.mxu0 %v540
    %715 = vmatpush.bf16.msra.mxu0 %v538
    %716 = vmatpush.bf16.msra.mxu0 %v536
    %717 = vmatmul.bf16.gmra.mxu0 %v239
    %v718 = vpop.f32.mrf.mxu0
    %v719 = vadd.f32 %v706, %v718
    %v720 = vpop.f32.mrf.mxu0
    %721 = vdwg.mxu0
    %722 = vmatpush.bf16.msra.mxu0 %v566
    %723 = vmatpush.bf16.msra.mxu0 %v564
    %724 = vmatpush.bf16.msra.mxu0 %v562
    %725 = vmatpush.bf16.msra.mxu0 %v560
    %726 = vmatpush.bf16.msra.mxu0 %v558
    %727 = vmatpush.bf16.msra.mxu0 %v556
    %728 = vmatpush.bf16.msra.mxu0 %v554
    %729 = vmatpush.bf16.msra.mxu0 %v552
    %730 = vmatmul.bf16.gmra.mxu0 %v240
    %v731 = vpop.f32.mrf.mxu0
    %v732 = vadd.f32 %v719, %v731
    %v733 = vpop.f32.mrf.mxu0
    %734 = vdwg.mxu0
    %v735 = vpack.c.bf16 %v680, %v680
    %v736 = vpack.c.bf16 %v732, %v732
    %v737 = vunpack.c.l.bf16 %v735
    %v738 = vunpack.c.l.bf16 %v736
    %v739 = vtanh.pop %v737
    %v740 = vtanh.pop %v738
    %v741 = vpack.c.bf16 %v739, %v739
    %v742 = vpack.c.bf16 %v740, %v740
    %v743 = vld [vmem:[#allocation10] sm:$0xff]
    %v744 = vld [vmem:[#allocation10 + $0x8] sm:$0xff]
    %v745 = vld [vmem:[#allocation10 + $0x10] sm:$0xff]
    %v746 = vld [vmem:[#allocation10 + $0x18] sm:$0xff]
    %v747 = vld [vmem:[#allocation10 + $0x20] sm:$0xff]
    %v748 = vld [vmem:[#allocation10 + $0x28] sm:$0xff]
    %v749 = vld [vmem:[#allocation10 + $0x30] sm:$0xff]
    %v750 = vld [vmem:[#allocation10 + $0x38] sm:$0xff]
    %v751 = vld [vmem:[#allocation10 + $0x40] sm:$0xff]
    %v752 = vld [vmem:[#allocation10 + $0x48] sm:$0xff]
    %v753 = vld [vmem:[#allocation10 + $0x50] sm:$0xff]
    %v754 = vld [vmem:[#allocation10 + $0x58] sm:$0xff]
    %v755 = vld [vmem:[#allocation10 + $0x60] sm:$0xff]
    %v756 = vld [vmem:[#allocation10 + $0x68] sm:$0xff]
    %v757 = vld [vmem:[#allocation10 + $0x70] sm:$0xff]
    %v758 = vld [vmem:[#allocation10 + $0x78] sm:$0xff]
    %v759 = vld [vmem:[#allocation10 + $0x80] sm:$0xff]
    %v760 = vld [vmem:[#allocation10 + $0x88] sm:$0xff]
    %v761 = vld [vmem:[#allocation10 + $0x90] sm:$0xff]
    %v762 = vld [vmem:[#allocation10 + $0x98] sm:$0xff]
    %v763 = vld [vmem:[#allocation10 + $0xa0] sm:$0xff]
    %v764 = vld [vmem:[#allocation10 + $0xa8] sm:$0xff]
    %v765 = vld [vmem:[#allocation10 + $0xb0] sm:$0xff]
    %v766 = vld [vmem:[#allocation10 + $0xb8] sm:$0xff]
    %v767 = vld [vmem:[#allocation10 + $0xc0] sm:$0xff]
    %v768 = vld [vmem:[#allocation10 + $0xc8] sm:$0xff]
    %v769 = vld [vmem:[#allocation10 + $0xd0] sm:$0xff]
    %v770 = vld [vmem:[#allocation10 + $0xd8] sm:$0xff]
    %v771 = vld [vmem:[#allocation10 + $0xe0] sm:$0xff]
    %v772 = vld [vmem:[#allocation10 + $0xe8] sm:$0xff]
    %v773 = vld [vmem:[#allocation10 + $0xf0] sm:$0xff]
    %v774 = vld [vmem:[#allocation10 + $0xf8] sm:$0xff]
    %v775 = vld [vmem:[%s6] sm:$0x3]
    %v777 = vperm.slane %v775, 0
    %v778 = vperm.slane %v775, 1
    %v813 = vunpack.c.l.b16 %v743
    %v814 = vunpack.c.h.b16 %v743
    %v815 = vunpack.c.l.b16 %v744
    %v816 = vunpack.c.h.b16 %v744
    %v817 = vunpack.c.l.b16 %v745
    %v818 = vunpack.c.h.b16 %v745
    %v819 = vunpack.c.l.b16 %v746
    %v820 = vunpack.c.h.b16 %v746
    %v821 = vunpack.c.l.b16 %v747
    %v822 = vunpack.c.h.b16 %v747
    %v823 = vunpack.c.l.b16 %v748
    %v824 = vunpack.c.h.b16 %v748
    %v825 = vunpack.c.l.b16 %v749
    %v826 = vunpack.c.h.b16 %v749
    %v827 = vunpack.c.l.b16 %v750
    %v828 = vunpack.c.h.b16 %v750
    %v829 = vunpack.c.l.b16 %v751
    %v830 = vunpack.c.h.b16 %v751
    %v831 = vunpack.c.l.b16 %v752
    %v832 = vunpack.c.h.b16 %v752
    %v833 = vunpack.c.l.b16 %v753
    %v834 = vunpack.c.h.b16 %v753
    %v835 = vunpack.c.l.b16 %v754
    %v836 = vunpack.c.h.b16 %v754
    %v837 = vunpack.c.l.b16 %v755
    %v838 = vunpack.c.h.b16 %v755
    %v839 = vunpack.c.l.b16 %v756
    %v840 = vunpack.c.h.b16 %v756
    %v841 = vunpack.c.l.b16 %v757
    %v842 = vunpack.c.h.b16 %v757
    %v843 = vunpack.c.l.b16 %v758
    %v844 = vunpack.c.h.b16 %v758
    %v845 = vunpack.c.l.b16 %v759
    %v846 = vunpack.c.h.b16 %v759
    %v847 = vunpack.c.l.b16 %v760
    %v848 = vunpack.c.h.b16 %v760
    %v849 = vunpack.c.l.b16 %v761
    %v850 = vunpack.c.h.b16 %v761
    %v851 = vunpack.c.l.b16 %v762
    %v852 = vunpack.c.h.b16 %v762
    %v853 = vunpack.c.l.b16 %v763
    %v854 = vunpack.c.h.b16 %v763
    %v855 = vunpack.c.l.b16 %v764
    %v856 = vunpack.c.h.b16 %v764
    %v857 = vunpack.c.l.b16 %v765
    %v858 = vunpack.c.h.b16 %v765
    %v859 = vunpack.c.l.b16 %v766
    %v860 = vunpack.c.h.b16 %v766
    %v861 = vunpack.c.l.b16 %v767
    %v862 = vunpack.c.h.b16 %v767
    %v863 = vunpack.c.l.b16 %v768
    %v864 = vunpack.c.h.b16 %v768
    %v865 = vunpack.c.l.b16 %v769
    %v866 = vunpack.c.h.b16 %v769
    %v867 = vunpack.c.l.b16 %v770
    %v868 = vunpack.c.h.b16 %v770
    %v869 = vunpack.c.l.b16 %v771
    %v870 = vunpack.c.h.b16 %v771
    %v871 = vunpack.c.l.b16 %v772
    %v872 = vunpack.c.h.b16 %v772
    %v873 = vunpack.c.l.b16 %v773
    %v874 = vunpack.c.h.b16 %v773
    %v875 = vunpack.c.l.b16 %v774
    %v876 = vunpack.c.h.b16 %v774
    %v877 = vpack.c.b16 %v815, %v813
    %v878 = vpack.c.b16 %v816, %v814
    %v879 = vpack.c.b16 %v819, %v817
    %v880 = vpack.c.b16 %v820, %v818
    %v881 = vpack.c.b16 %v823, %v821
    %v882 = vpack.c.b16 %v824, %v822
    %v883 = vpack.c.b16 %v827, %v825
    %v884 = vpack.c.b16 %v828, %v826
    %v885 = vpack.c.b16 %v831, %v829
    %v886 = vpack.c.b16 %v832, %v830
    %v887 = vpack.c.b16 %v835, %v833
    %v888 = vpack.c.b16 %v836, %v834
    %v889 = vpack.c.b16 %v839, %v837
    %v890 = vpack.c.b16 %v840, %v838
    %v891 = vpack.c.b16 %v843, %v841
    %v892 = vpack.c.b16 %v844, %v842
    %v893 = vpack.c.b16 %v847, %v845
    %v894 = vpack.c.b16 %v848, %v846
    %v895 = vpack.c.b16 %v851, %v849
    %v896 = vpack.c.b16 %v852, %v850
    %v897 = vpack.c.b16 %v855, %v853
    %v898 = vpack.c.b16 %v856, %v854
    %v899 = vpack.c.b16 %v859, %v857
    %v900 = vpack.c.b16 %v860, %v858
    %v901 = vpack.c.b16 %v863, %v861
    %v902 = vpack.c.b16 %v864, %v862
    %v903 = vpack.c.b16 %v867, %v865
    %v904 = vpack.c.b16 %v868, %v866
    %v905 = vpack.c.b16 %v871, %v869
    %v906 = vpack.c.b16 %v872, %v870
    %v907 = vpack.c.b16 %v875, %v873
    %v908 = vpack.c.b16 %v876, %v874
    %941 = vmatpush.bf16.msra.mxu0 %v891
    %942 = vmatpush.bf16.msra.mxu0 %v889
    %943 = vmatpush.bf16.msra.mxu0 %v887
    %944 = vmatpush.bf16.msra.mxu0 %v885
    %945 = vmatpush.bf16.msra.mxu0 %v883
    %946 = vmatpush.bf16.msra.mxu0 %v881
    %947 = vmatpush.bf16.msra.mxu0 %v879
    %948 = vmatpush.bf16.msra.mxu0 %v877
    %949 = vmatmul.bf16.gmra.mxu0 %v741
    %v950 = vpop.f32.mrf.mxu0
    %v951 = vadd.f32 %v777, %v950
    %v952 = vpop.f32.mrf.mxu0
    %953 = vdwg.mxu0
    %954 = vmatpush.bf16.msra.mxu0 %v907
    %955 = vmatpush.bf16.msra.mxu0 %v905
    %956 = vmatpush.bf16.msra.mxu0 %v903
    %957 = vmatpush.bf16.msra.mxu0 %v901
    %958 = vmatpush.bf16.msra.mxu0 %v899
    %959 = vmatpush.bf16.msra.mxu0 %v897
    %960 = vmatpush.bf16.msra.mxu0 %v895
    %961 = vmatpush.bf16.msra.mxu0 %v893
    %962 = vmatmul.bf16.gmra.mxu0 %v742
    %v963 = vpop.f32.mrf.mxu0
    %v964 = vadd.f32 %v951, %v963
    %v965 = vpop.f32.mrf.mxu0
    %966 = vdwg.mxu0
    %967 = vmatpush.bf16.msra.mxu0 %v892
    %968 = vmatpush.bf16.msra.mxu0 %v890
    %969 = vmatpush.bf16.msra.mxu0 %v888
    %970 = vmatpush.bf16.msra.mxu0 %v886
    %971 = vmatpush.bf16.msra.mxu0 %v884
    %972 = vmatpush.bf16.msra.mxu0 %v882
    %973 = vmatpush.bf16.msra.mxu0 %v880
    %974 = vmatpush.bf16.msra.mxu0 %v878
    %975 = vmatmul.bf16.gmra.mxu0 %v741
    %v976 = vpop.f32.mrf.mxu0
    %v977 = vadd.f32 %v778, %v976
    %v978 = vpop.f32.mrf.mxu0
    %979 = vdwg.mxu0
    %980 = vmatpush.bf16.msra.mxu0 %v908
    %981 = vmatpush.bf16.msra.mxu0 %v906
    %982 = vmatpush.bf16.msra.mxu0 %v904
    %983 = vmatpush.bf16.msra.mxu0 %v902
    %984 = vmatpush.bf16.msra.mxu0 %v900
    %985 = vmatpush.bf16.msra.mxu0 %v898
    %986 = vmatpush.bf16.msra.mxu0 %v896
    %987 = vmatpush.bf16.msra.mxu0 %v894
    %988 = vmatmul.bf16.gmra.mxu0 %v742
    %v989 = vpop.f32.mrf.mxu0
    %v990 = vadd.f32 %v977, %v989
    %v991 = vpop.f32.mrf.mxu0
    %992 = vdwg.mxu0
    %v993 = vpack.c.bf16 %v990, %v964
    %v994 = vunpack.c.l.bf16 %v993
    %v995 = vunpack.c.h.bf16 %v993
    %v996 = vtanh.pop %v994
    %v997 = vtanh.pop %v995
    %v998 = vpack.c.bf16 %v997, %v996
    %v999 = vld [vmem:[%s7] sm:$0x3]
    %v1000 = vunpack.c.l.bf16 %v998
    %v1001 = vunpack.c.h.bf16 %v998
    %v1003 = vperm.slane %v999, 0
    %v1004 = vperm.slane %v999, 1
    %v1007 = vmul.f32 %v1000, %v1003
    %v1008 = vmul.f32 %v1001, %v1004
    %v1009 = vadd.f32 %v1007, %v1008
    %1010 = vadd.xlane.f32.xlu0 %v1009
    %v1011 = vpop.xlane.xlu0 %1010
    %v1012 = vld [vmem:[#allocation2] sm:$0x1]
    %v1014 = vperm.slane %v1012, 0
    %v1016 = vadd.f32 %v1011, %v1014
    %vm1017 = vcmask 7168
    %1018 = vst.msk [vmem:[%s9] sm:$0xff] %vm1017, %v1016
    // Predicated region
    $region58: #{tpu_custom_call.1} parent=1 // pred_check
      _
    $region59: #{tpu_custom_call.1} parent=1 // pred_check_branch
      %1020 = sbr.rel (0) target = $region61
    $region60: #{tpu_custom_call.1} parent=1 // pred_region
      _
    $region61: #{tpu_custom_call.1} parent=1 // pred_fallthru
      _
    // Predicated region
    $region62: #{tpu_custom_call.1} parent=1 // pred_check
      _
    $region63: #{tpu_custom_call.1} parent=1 // pred_check_branch
      %1022 = sbr.rel (0) target = $region65
    $region64: #{tpu_custom_call.1} parent=1 // pred_region
      _
    $region65: #{tpu_custom_call.1} parent=1 // pred_fallthru
      _
    %1023 = vsyncpa [#allocation4], 1
    %1024 = vsyncpa [#allocation6], 1
    %1025 = vsyncpa [#allocation9], 1

</llo_original>
